<compile_context>
chip_gen: v7x
topology: tpu7x:2x2x1
jax: 0.10.0
libtpu: 0.0.40
codegen_flags: <defaults>
</compile_context>

<pallas_src>
import functools

import numpy as np
import jax
import jax.numpy as jnp
from jax import lax
from jax.experimental import pallas as pl
from jax.experimental.pallas import tpu as pltpu


# ---------------------------------------------------------------------------
# Kernels
# ---------------------------------------------------------------------------
def _anchor_kernel(col_const_ref, xs_ref, ys_ref, out_ref):
    """No-wrap fast path: out = select(is_x, x_base, y_base) + col_const."""
    wcols = out_ref.shape[1]
    cols = lax.broadcasted_iota(jnp.int32, (1, wcols), 1)
    is_x = (cols & 1) == 0                       # even columns are x components
    out_ref[...] = jnp.where(is_x, xs_ref[...], ys_ref[...]) + col_const_ref[...]


def _anchor_kernel_wrap(col_const_ref, koffxs_ref, wrapd_ref, xs_ref, ys_ref,
                        out_ref, *, w_stride):
    """General path: one compare + conditional delta handles the x-wrap / y+1."""
    wcols = out_ref.shape[1]
    cols = lax.broadcasted_iota(jnp.int32, (1, wcols), 1)
    is_x = (cols & 1) == 0
    xs = xs_ref[...]                              # (tile_rows, 1) x_base*stride
    base = jnp.where(is_x, xs, ys_ref[...]) + col_const_ref[...]
    # wrap iff x_base + koff_x >= W  (exact in f32: integers * pow2 stride)
    wrap = (xs + koffxs_ref[...]) >= w_stride
    out_ref[...] = base + jnp.where(wrap, wrapd_ref[...], 0.0)


# ---------------------------------------------------------------------------
# Host-side glue
# ---------------------------------------------------------------------------
def _generate_anchor_template(stride, row, line):
    # Mirrors generate_anchor_points + the np.insert of a zero row at A//2.
    row_step = stride / row
    line_step = stride / line
    shift_x = (np.arange(1, line + 1) - 0.5) * line_step - stride / 2
    shift_y = (np.arange(1, row + 1) - 0.5) * row_step - stride / 2
    sx, sy = np.meshgrid(shift_x, shift_y)
    anchors = np.vstack((sx.ravel(), sy.ravel())).transpose()     # (row*line, 2)
    anchors = np.insert(anchors, anchors.shape[0] // 2,
                        np.zeros((1, 2)), axis=0)                 # (row*line+1, 2)
    return anchors.astype(np.float64)


def _choose_tile_rows(n_rows, bytes_per_row):
    """~4 MiB output tiles, multiples of 8 rows, >=2 (even-preferred) blocks."""
    if n_rows <= 8:
        return n_rows                         # single full-extent block (exempt)
    cap = max(8, ((4 << 20) // bytes_per_row) // 8 * 8)
    n_blocks = max(2, pl.cdiv(n_rows, cap))
    if n_blocks % 2:
        n_blocks += 1                         # balanced across v7x's 2 TCs
    return (pl.cdiv(n_rows, n_blocks) + 7) // 8 * 8


@functools.lru_cache(maxsize=None)
def _anchor_points_cached(H, W, pyramid_level, row, line):
    stride = 2 ** pyramid_level
    anchors = _generate_anchor_template(stride, row, line)        # (A, 2) f64
    A = anchors.shape[0]
    two_a = 2 * A

    # Lane-dense packing: `pack` spatial positions per output row so the last
    # dim (wcols) is a multiple of 128 lanes.
    pack = int(np.lcm(two_a, 128)) // two_a
    wcols = pack * two_a

    # Per-column host constants (fold koff*stride + 0.5*stride + anchor).
    koff = np.repeat(np.arange(pack, dtype=np.int64), two_a)      # (wcols,)
    isx = np.tile(np.array([1, 0], dtype=np.int64), pack * A)     # (wcols,)
    anchor_tiled = np.tile(anchors.reshape(-1), pack)             # (wcols,) f64
    koff_x = koff % W
    koff_y = koff // W
    col_const = ((np.where(isx == 1, koff_x, koff_y) + 0.5) * stride
                 + anchor_tiled).astype(np.float32).reshape(1, wcols)

    K = H * W
    n_rows = pl.cdiv(K, pack)                   # packed rows actually needed
    bytes_per_row = wcols * 4
    tile_rows = _choose_tile_rows(n_rows, bytes_per_row)
    n_blocks = pl.cdiv(n_rows, tile_rows)
    rows_pad = n_blocks * tile_rows             # padding only for row tables

    # Per-packed-row bases, precomputed on host (no int div/mod in-kernel).
    ridx = np.arange(rows_pad, dtype=np.int64) * pack
    xs_col = ((ridx % W) * float(stride)).astype(np.float32).reshape(rows_pad, 1)
    ys_col = ((ridx // W) * float(stride)).astype(np.float32).reshape(rows_pad, 1)

    # x never wraps within a packed row iff W % pack == 0 or pack % W == 0.
    need_wrap = not (W % pack == 0 or pack % W == 0)

    const_spec = pl.BlockSpec((1, wcols), lambda i: (0, 0))
    row_spec = pl.BlockSpec((tile_rows, 1), lambda i: (i, 0))
    out_spec = pl.BlockSpec((tile_rows, wcols), lambda i: (i, 0))
    out_shape = jax.ShapeDtypeStruct((n_rows, wcols), jnp.float32)
    cparams = pltpu.CompilerParams(dimension_semantics=("parallel",))
    cost = pl.CostEstimate(flops=6 * K * two_a, transcendentals=0,
                           bytes_accessed=K * two_a * 4)

    if need_wrap:
        koffxs = (koff_x * float(stride)).astype(np.float32).reshape(1, wcols)
        wrapd = np.where(isx == 1, -float(W * stride),
                         float(stride)).astype(np.float32).reshape(1, wcols)
        kernel = functools.partial(_anchor_kernel_wrap,
                                   w_stride=float(W * stride))
        out = pl.pallas_call(
            kernel, out_shape=out_shape, grid=(n_blocks,),
            in_specs=[const_spec, const_spec, const_spec, row_spec, row_spec],
            out_specs=out_spec, compiler_params=cparams, cost_estimate=cost,
        )(jnp.asarray(col_const), jnp.asarray(koffxs), jnp.asarray(wrapd),
          jnp.asarray(xs_col), jnp.asarray(ys_col))
    else:
        out = pl.pallas_call(
            _anchor_kernel, out_shape=out_shape, grid=(n_blocks,),
            in_specs=[const_spec, row_spec, row_spec],
            out_specs=out_spec, compiler_params=cparams, cost_estimate=cost,
        )(jnp.asarray(col_const), jnp.asarray(xs_col), jnp.asarray(ys_col))

    total = K * two_a
    flat = out.reshape(-1)                      # free: memory order unchanged
    if n_rows * wcols != total:                 # only when K % pack != 0
        flat = flat[:total]
    return flat.reshape(1, K * A, 2)            # PyTorch layout (1, K*A, 2)


def anchor_points_forward(image_shape, pyramid_level, row, line):
    """JAX/Pallas equivalent of AnchorPoints(pyramid_level,row,line)(image_shape)."""
    H, W = int(image_shape[0]), int(image_shape[1])
    return _anchor_points_cached(H, W, int(pyramid_level), int(row), int(line))


# ---------------------------------------------------------------------------
# Reference + demo
# ---------------------------------------------------------------------------
def _numpy_reference(image_shape, pyramid_level, row, line):
    stride = 2 ** pyramid_level
    anchors = _generate_anchor_template(stride, row, line)
    sx = (np.arange(0, image_shape[1]) + 0.5) * stride
    sy = (np.arange(0, image_shape[0]) + 0.5) * stride
    sx, sy = np.meshgrid(sx, sy)
    shifts = np.vstack((sx.ravel(), sy.ravel())).transpose()
    A = anchors.shape[0]
    K = shifts.shape[0]
    all_pts = anchors.reshape((1, A, 2)) + shifts.reshape((1, K, 2)).transpose((1, 0, 2))
    return all_pts.reshape((1, K * A, 2)).astype(np.float32)


if __name__ == "__main__":
    # Deterministic example "image" (NCHW); only its spatial shape matters here.
    key = jax.random.PRNGKey(0)
    image = jax.random.normal(key, (2, 4, 16, 16), dtype=jnp.float32)
    image_shape = image.shape[2:]            # (H, W) = (16, 16)
    pyramid_level, row, line = 3, 2, 2       # stride=8, A = 2*2 + 1 = 5

    out = anchor_points_forward(image_shape, pyramid_level, row, line)
    out = jax.block_until_ready(out)
    ref = _numpy_reference(image_shape, pyramid_level, row, line)
    assert out.shape == ref.shape, (out.shape, ref.shape)
    np.testing.assert_allclose(np.asarray(out), ref, rtol=1e-6, atol=1e-4)

    # Extra small configs: exercise the wrap-correction path and the ragged tail.
    for hw, lvl, r, l in [((8, 24), 2, 2, 2), ((6, 10), 3, 3, 3)]:
        o = jax.block_until_ready(anchor_points_forward(hw, lvl, r, l))
        rf = _numpy_reference(hw, lvl, r, l)
        assert o.shape == rf.shape, (o.shape, rf.shape)
        np.testing.assert_allclose(np.asarray(o), rf, rtol=1e-6, atol=1e-4)

    print("KERNEL_OK")
</pallas_src>

<mosaic_0001>
module attributes {stable_mosaic.version = 11 : i64} {
  func.func @_anchor_kernel(%arg0: i32, %arg1: memref<1x640xf32, #tpu.memory_space<vmem>>, %arg2: memref<4x1xf32, #tpu.memory_space<vmem>>, %arg3: memref<4x1xf32, #tpu.memory_space<vmem>>, %arg4: memref<4x640xf32, #tpu.memory_space<vmem>>) attributes {dimension_semantics = [#tpu.dimension_semantics<parallel>], iteration_bounds = array<i64: 1>, scalar_prefetch = 0 : i64, scratch_operands = 0 : i64, tpu.core_type = #tpu.core_type<tc>, window_params = [{pipeline_mode = #tpu.pipeline_mode<synchronous>, transform_indices = @transform_0, window_bounds = array<i64: 1, 640>}, {transform_indices = @transform_1, window_bounds = array<i64: 4, 1>}, {transform_indices = @transform_2, window_bounds = array<i64: 4, 1>}, {transform_indices = @transform_3, window_bounds = array<i64: 4, 640>}]} {
    %0 = tpu.iota {dimensions = array<i32: 1>} : vector<1x640xi32>
    %c1_i32 = arith.constant 1 : i32
    %1 = vector.broadcast %c1_i32 : i32 to vector<1x640xi32>
    %2 = arith.andi %0, %1 : vector<1x640xi32>
    %c0_i32 = arith.constant 0 : i32
    %3 = vector.broadcast %c0_i32 : i32 to vector<1x640xi32>
    %4 = arith.cmpi eq, %2, %3 : vector<1x640xi32>
    %c0 = arith.constant 0 : index
    %c0_0 = arith.constant 0 : index
    %5 = vector.load %arg2[%c0, %c0_0] : memref<4x1xf32, #tpu.memory_space<vmem>>, vector<4x1xf32>
    %c0_1 = arith.constant 0 : index
    %c0_2 = arith.constant 0 : index
    %6 = vector.load %arg3[%c0_1, %c0_2] : memref<4x1xf32, #tpu.memory_space<vmem>>, vector<4x1xf32>
    %7 = vector.shape_cast %4 : vector<1x640xi1> to vector<1x640xi1>
    %8 = vector.broadcast %7 : vector<1x640xi1> to vector<4x640xi1>
    %9 = vector.shape_cast %5 : vector<4x1xf32> to vector<4x1xf32>
    %10 = vector.broadcast %9 : vector<4x1xf32> to vector<4x640xf32>
    %11 = vector.shape_cast %6 : vector<4x1xf32> to vector<4x1xf32>
    %12 = vector.broadcast %11 : vector<4x1xf32> to vector<4x640xf32>
    %13 = arith.select %8, %10, %12 : vector<4x640xi1>, vector<4x640xf32>
    %c0_3 = arith.constant 0 : index
    %c0_4 = arith.constant 0 : index
    %14 = vector.load %arg1[%c0_3, %c0_4] : memref<1x640xf32, #tpu.memory_space<vmem>>, vector<1x640xf32>
    %15 = vector.broadcast %14 : vector<1x640xf32> to vector<4x640xf32>
    %16 = arith.addf %13, %15 : vector<4x640xf32>
    %c0_5 = arith.constant 0 : index
    %c0_6 = arith.constant 0 : index
    %17 = vector.load %arg4[%c0_5, %c0_6] : memref<4x640xf32, #tpu.memory_space<vmem>>, vector<4x640xf32>
    tpu.vector_store %arg4[%c0_5, %c0_6], %16 {strides = array<i32>} : memref<4x640xf32, #tpu.memory_space<vmem>>, vector<4x640xf32>,
    return
  }
  func.func @transform_0(%arg0: i32) -> (i32, i32) {
    %c0_i32 = arith.constant 0 : i32
    %c0_i32_0 = arith.constant 0 : i32
    %c0_i32_1 = arith.constant 0 : i32
    return %c0_i32, %c0_i32_0 : i32, i32
  }
  func.func @transform_1(%arg0: i32) -> (i32, i32) {
    %c0_i32 = arith.constant 0 : i32
    %c0_i32_0 = arith.constant 0 : i32
    return %arg0, %c0_i32 : i32, i32
  }
  func.func @transform_2(%arg0: i32) -> (i32, i32) {
    %c0_i32 = arith.constant 0 : i32
    %c0_i32_0 = arith.constant 0 : i32
    return %arg0, %c0_i32 : i32, i32
  }
  func.func @transform_3(%arg0: i32) -> (i32, i32) {
    %c0_i32 = arith.constant 0 : i32
    %c0_i32_0 = arith.constant 0 : i32
    return %arg0, %c0_i32 : i32, i32
  }
}

</mosaic_0001>

<llo_original>
// kernel: tpu_custom_call.1
$region0: #{tpu_custom_call.1}
  #allocation0 [shape = 'u32[]', space=smem, size = 0x4, offset = 0x4, fixed_abs, tag = 'smem constant byte address 0x4 - core index']
  #allocation1 [shape = 'u32[144,128]{1,0:T(1,128)}', space=vmem, size = 0x12000, scoped, tag = 'internal scratch']
  %s0 = inlined_call_operand.vmem [shape: f32[1,640], index: 0, kind: input, shape index: {}]
  %s1 = inlined_call_operand.vmem [shape: f32[4,1], index: 1, kind: input, shape index: {}]
  %s2 = inlined_call_operand.vmem [shape: f32[4,1], index: 2, kind: input, shape index: {}]
  %s3 = inlined_call_operand.hbm [shape: f32[4,640], index: 3, kind: output, shape index: {}]
  %s4 = sld [smem:[#allocation0]]
  $region22: #{tpu_custom_call.1} parent=0
    _
  %s6 = ssub.s32 1, %s4
  %s7 = scalar_select 0, %s6, %s4
  $region1: #{tpu_custom_call.1} parent=0
    #allocation2 [shape = 'u8[10240]{0}', space=vmem, size = 0x2800, scoped, tag = 'output window, operand 0, single buffered']
    #allocation3 [shape = 's32[1]{0}', space=sflag, size = 0x4, scoped, tag = 'scoped memory for tpu_custom_call.1']
    %8 = vsyncpa [#allocation3], 0
    // Predicated region
    $region2: #{tpu_custom_call.1} parent=1 // pred_check
      _
    $region3: #{tpu_custom_call.1} parent=1 // pred_check_branch
      %10 = sbr.rel (0) target = $region5
    $region4: #{tpu_custom_call.1} parent=1 // pred_region
      _
    $region5: #{tpu_custom_call.1} parent=1 // pred_fallthru
      _
    // Predicated region
    $region6: #{tpu_custom_call.1} parent=1 // pred_check
      _
    $region7: #{tpu_custom_call.1} parent=1 // pred_check_branch
      %12 = sbr.rel (0) target = $region9
    $region8: #{tpu_custom_call.1} parent=1 // pred_region
      _
    $region9: #{tpu_custom_call.1} parent=1 // pred_fallthru
      _
    // Predicated region
    $region10: #{tpu_custom_call.1} parent=1 // pred_check
      _
    $region11: #{tpu_custom_call.1} parent=1 // pred_check_branch
      %14 = sbr.rel (0) target = $region13
    $region12: #{tpu_custom_call.1} parent=1 // pred_region
      _
    $region13: #{tpu_custom_call.1} parent=1 // pred_fallthru
      _
    %v15 = vlaneseq
    %v16 = vand.u32 %v15, 127
    %v17 = vadd.s32 %v16, 128
    %v18 = vadd.s32 %v16, 256
    %v19 = vadd.s32 %v16, 384
    %v20 = vadd.s32 %v16, 512
    %v21 = vand.u32 %v16, 1
    %v22 = vand.u32 %v17, 1
    %v23 = vand.u32 %v18, 1
    %v24 = vand.u32 %v19, 1
    %v25 = vand.u32 %v20, 1
    %vm26 = vcmp.eq.s32.totalorder %v21, 0
    %vm27 = vcmp.eq.s32.totalorder %v22, 0
    %vm28 = vcmp.eq.s32.totalorder %v23, 0
    %vm29 = vcmp.eq.s32.totalorder %v24, 0
    %vm30 = vcmp.eq.s32.totalorder %v25, 0
    %v31 = vld [vmem:[%s1] sm:$0xf]
    %v32 = vld [vmem:[%s2] sm:$0xf]
    %v33 = vsel %vm26, 1, 0
    %v34 = vsel %vm27, 1, 0
    %v35 = vsel %vm28, 1, 0
    %v36 = vsel %vm29, 1, 0
    %v37 = vsel %vm30, 1, 0
    %vm38 = vcmp.eq.s32.totalorder %v33, 1
    %vm39 = vcmp.eq.s32.totalorder %v34, 1
    %vm40 = vcmp.eq.s32.totalorder %v35, 1
    %vm41 = vcmp.eq.s32.totalorder %v36, 1
    %vm42 = vcmp.eq.s32.totalorder %v37, 1
    %44 = vset.pattern.permute.xlu0 0
    %45 = vperm.xlu0 %44, %v31
    %v46 = vpop.permute.xlu0 %45
    %49 = vset.pattern.permute.xlu0 0
    %50 = vperm.xlu0 %49, %v32
    %v51 = vpop.permute.xlu0 %50
    %v53 = vsel %vm38, %v46, %v51
    %v54 = vsel %vm39, %v46, %v51
    %v55 = vsel %vm40, %v46, %v51
    %v56 = vsel %vm41, %v46, %v51
    %v57 = vsel %vm42, %v46, %v51
    %v58 = vld [vmem:[%s0] sm:$0x1f]
    %v60 = vlaneseq
    %v61 = vshrl.u32 %v60, 7
    %v62 = vsub.s32 0, %v61
    %v63 = vrot.slane %v58, %v62
    %v64 = vlaneseq
    %v65 = vshrl.u32 %v64, 7
    %v66 = vsub.s32 1, %v65
    %v67 = vrot.slane %v58, %v66
    %v68 = vlaneseq
    %v69 = vshrl.u32 %v68, 7
    %v70 = vsub.s32 2, %v69
    %v71 = vrot.slane %v58, %v70
    %v72 = vlaneseq
    %v73 = vshrl.u32 %v72, 7
    %v74 = vsub.s32 3, %v73
    %v75 = vrot.slane %v58, %v74
    %v76 = vlaneseq
    %v77 = vshrl.u32 %v76, 7
    %v78 = vsub.s32 4, %v77
    %v79 = vrot.slane %v58, %v78
    %v85 = vadd.f32 %v53, %v63
    %v86 = vadd.f32 %v54, %v67
    %v87 = vadd.f32 %v55, %v71
    %v88 = vadd.f32 %v56, %v75
    %v89 = vadd.f32 %v57, %v79
    %v94 = vcombine.low %v85, %v86
    %v95 = vcombine.low %v87, %v88
    %98 = vst [vmem:[#allocation2] sm:$0xff] %v94
    %99 = vst [vmem:[#allocation2 + $0x8] sm:$0xff] %v95
    %100 = vst [vmem:[#allocation2 + $0x10] sm:$0xf] %v89
    // Predicated region
    $region14: #{tpu_custom_call.1} parent=1 // pred_check
      _
    $region15: #{tpu_custom_call.1} parent=1 // pred_check_branch
      %102 = sbr.rel (0) target = $region17
    $region16: #{tpu_custom_call.1} parent=1 // pred_region
      %s104 = ssub.s32 320, 320
      %105 = vsyncadd [#allocation3], %s104
      %s107 = sshll.u32 [#allocation2], 4
      %s108 = int_to_ptr.vmem [resolvable:$true] %s107
      %110 = dma.vmem_to_hbm [thread:$0]  %s108, 320, %s3, [#allocation3]
    $region17: #{tpu_custom_call.1} parent=1 // pred_fallthru
      _
    // Predicated region
    $region18: #{tpu_custom_call.1} parent=1 // pred_check
      _
    $region19: #{tpu_custom_call.1} parent=1 // pred_check_branch
      %112 = sbr.rel (0) target = $region21
    $region20: #{tpu_custom_call.1} parent=1 // pred_region
      %113 = dma.done [#allocation3], 320
    $region21: #{tpu_custom_call.1} parent=1 // pred_fallthru
      _
    %114 = vsyncpa [#allocation3], 1

</llo_original>
